<compile_context>
chip_gen: v6e
topology: v6e:2x2x1
jax: 0.10.0
libtpu: 0.0.40
codegen_flags: <defaults>
</compile_context>

<pallas_src>
import functools

import numpy as np
import jax
import jax.numpy as jnp
from jax.experimental import pallas as pl
from jax.experimental.pallas import tpu as pltpu


def _loss_kernel(theta_ref, theta_gt_ref, x_ref, y_ref, out_ref):
    """One batch-block of the transformed-grid loss.

    theta_ref / theta_gt_ref : (TB, 6) affine params (rows: [t00,t01,t02,t10,t11,t12])
    x_ref / y_ref            : (1, N) grid coordinates
    out_ref                  : (1, 1, 1) partial (un-normalized) sum for this block
    """
    # Fold the ground-truth subtraction into the parameters (6 subs per row).
    d = theta_ref[...] - theta_gt_ref[...]            # (TB, 6)

    X = x_ref[...]                                    # (1, N)
    Y = y_ref[...]                                    # (1, N)

    # P'(theta) - P'(theta_GT) = dA @ P + dt, evaluated directly.
    # (TB,1) columns broadcast against (1,N) rows -> dense (TB,N) tiles.
    dx = d[:, 0:1] * X + d[:, 1:2] * Y + d[:, 2:3]    # (TB, N)
    dy = d[:, 3:4] * X + d[:, 4:5] * Y + d[:, 5:6]    # (TB, N)

    sq = dx * dx + dy * dy                            # sum over coord axis

    # Single cross-lane reduction per block (not per batch element).
    out_ref[...] = jnp.sum(sq).reshape(1, 1, 1)


def make_grid_P(grid_size: int):
    """Replicates the numpy meshgrid construction in __init__.

    Returns X, Y each of shape (1, N) float32 (N = grid_size**2).
    """
    axis_coords = np.linspace(-1.0, 1.0, grid_size)
    N = grid_size * grid_size
    X, Y = np.meshgrid(axis_coords, axis_coords)
    X = np.reshape(X, (1, N)).astype(np.float32)
    Y = np.reshape(Y, (1, N)).astype(np.float32)
    return jnp.asarray(X), jnp.asarray(Y)


def _round_up(x: int, m: int) -> int:
    return (x + m - 1) // m * m


def transformed_grid_loss(theta: jnp.ndarray,
                          theta_gt: jnp.ndarray,
                          X: jnp.ndarray,
                          Y: jnp.ndarray) -> jnp.ndarray:
    """theta, theta_gt: (B, 6) affine params.  X, Y: (1, N) grid coords."""
    B = theta.shape[0]
    N = X.shape[1]

    theta = theta.reshape(B, 6).astype(jnp.float32)
    theta_gt = theta_gt.reshape(B, 6).astype(jnp.float32)
    X = X.astype(jnp.float32)
    Y = Y.astype(jnp.float32)

    # Batch tile on the sublane axis. For small B everything fits in one step.
    TB = 8 if B <= 8 else min(64, _round_up(B, 8))
    Bp = _round_up(B, TB)
    num_blocks = Bp // TB

    pad = Bp - B
    if pad:
        # Zero-pad BOTH theta and theta_GT: padded rows give d = 0 and thus
        # contribute exactly 0 to the sum (denominator stays B * N).
        theta = jnp.pad(theta, ((0, pad), (0, 0)))
        theta_gt = jnp.pad(theta_gt, ((0, pad), (0, 0)))

    partials = pl.pallas_call(
        _loss_kernel,
        out_shape=jax.ShapeDtypeStruct((num_blocks, 1, 1), jnp.float32),
        grid_spec=pltpu.PrefetchScalarGridSpec(
            num_scalar_prefetch=0,
            grid=(num_blocks,),
            in_specs=[
                pl.BlockSpec((TB, 6), lambda i: (i, 0)),   # theta block
                pl.BlockSpec((TB, 6), lambda i: (i, 0)),   # theta_GT block
                pl.BlockSpec((1, N), lambda i: (0, 0)),    # X (reused each step)
                pl.BlockSpec((1, N), lambda i: (0, 0)),    # Y (reused each step)
            ],
            out_specs=pl.BlockSpec((1, 1, 1), lambda i: (i, 0, 0)),
        ),
        compiler_params=pltpu.CompilerParams(
            dimension_semantics=("parallel",),   # independent per-block partial sums
        ),
    )(theta, theta_gt, X, Y)

    # Finish the mean over (B, N) in the wrapper (trivial; keeps the grid parallel
    # and avoids a serialized shared accumulator).
    return jnp.sum(partials) / jnp.float32(B * N)


def _reference_loss(theta, theta_gt, P):
    """Plain-JAX reference mirroring the PyTorch forward."""
    B = theta.shape[0]
    N = P.shape[1]
    Pb = jnp.broadcast_to(P[None], (B, 2, N))
    tm = theta.reshape(B, 2, 3)
    gm = theta_gt.reshape(B, 2, 3)
    Pp = jnp.einsum("bij,bjn->bin", tm[:, :, :2], Pb) + tm[:, :, 2:3]
    Pg = jnp.einsum("bij,bjn->bin", gm[:, :, :2], Pb) + gm[:, :, 2:3]
    loss = jnp.sum((Pp - Pg) ** 2, axis=1)
    return jnp.mean(loss)


if __name__ == "__main__":
    # Small shapes consistent with the module: batch=2, grid_size=16 -> N=256.
    batch = 2
    grid_size = 16

    key = jax.random.PRNGKey(0)
    k1, k2 = jax.random.split(key)
    identity = jnp.array([1.0, 0.0, 0.0, 0.0, 1.0, 0.0], dtype=jnp.float32)
    theta = identity[None, :] + 0.1 * jax.random.normal(k1, (batch, 6), dtype=jnp.float32)
    theta_gt = identity[None, :] + 0.1 * jax.random.normal(k2, (batch, 6), dtype=jnp.float32)

    X, Y = make_grid_P(grid_size)

    loss = transformed_grid_loss(theta, theta_gt, X, Y)
    loss = jax.block_until_ready(loss)

    ref = _reference_loss(theta, theta_gt, jnp.concatenate([X, Y], axis=0))
    assert np.allclose(np.asarray(loss), np.asarray(ref), rtol=1e-5, atol=1e-6), (
        f"mismatch: pallas={loss} ref={ref}"
    )
    print("KERNEL_OK")
</pallas_src>

<mosaic_0001>
module attributes {stable_mosaic.version = 11 : i64} {
  func.func @_loss_kernel(%arg0: i32, %arg1: memref<8x6xf32, #tpu.memory_space<vmem>>, %arg2: memref<8x6xf32, #tpu.memory_space<vmem>>, %arg3: memref<1x256xf32, #tpu.memory_space<vmem>>, %arg4: memref<1x256xf32, #tpu.memory_space<vmem>>, %arg5: memref<1x1x1xf32, #tpu.memory_space<vmem>>) attributes {dimension_semantics = [#tpu.dimension_semantics<parallel>], iteration_bounds = array<i64: 1>, scalar_prefetch = 0 : i64, scratch_operands = 0 : i64, tpu.core_type = #tpu.core_type<tc>, window_params = [{transform_indices = @transform_0, window_bounds = array<i64: 8, 6>}, {transform_indices = @transform_1, window_bounds = array<i64: 8, 6>}, {pipeline_mode = #tpu.pipeline_mode<synchronous>, transform_indices = @transform_2, window_bounds = array<i64: 1, 256>}, {pipeline_mode = #tpu.pipeline_mode<synchronous>, transform_indices = @transform_3, window_bounds = array<i64: 1, 256>}, {transform_indices = @transform_4, window_bounds = array<i64: 1, 1, 1>}]} {
    %c0 = arith.constant 0 : index
    %c0_0 = arith.constant 0 : index
    %0 = vector.load %arg1[%c0, %c0_0] : memref<8x6xf32, #tpu.memory_space<vmem>>, vector<8x6xf32>
    %c0_1 = arith.constant 0 : index
    %c0_2 = arith.constant 0 : index
    %1 = vector.load %arg2[%c0_1, %c0_2] : memref<8x6xf32, #tpu.memory_space<vmem>>, vector<8x6xf32>
    %2 = arith.subf %0, %1 : vector<8x6xf32>
    %c0_3 = arith.constant 0 : index
    %c0_4 = arith.constant 0 : index
    %3 = vector.load %arg3[%c0_3, %c0_4] : memref<1x256xf32, #tpu.memory_space<vmem>>, vector<1x256xf32>
    %c0_5 = arith.constant 0 : index
    %c0_6 = arith.constant 0 : index
    %4 = vector.load %arg4[%c0_5, %c0_6] : memref<1x256xf32, #tpu.memory_space<vmem>>, vector<1x256xf32>
    %5 = vector.extract_strided_slice %2 {offsets = [0, 0], sizes = [8, 1], strides = [1, 1]} : vector<8x6xf32> to vector<8x1xf32>
    %6 = vector.broadcast %5 : vector<8x1xf32> to vector<8x256xf32>
    %7 = vector.broadcast %3 : vector<1x256xf32> to vector<8x256xf32>
    %8 = arith.mulf %6, %7 : vector<8x256xf32>
    %9 = vector.extract_strided_slice %2 {offsets = [0, 1], sizes = [8, 1], strides = [1, 1]} : vector<8x6xf32> to vector<8x1xf32>
    %10 = vector.broadcast %9 : vector<8x1xf32> to vector<8x256xf32>
    %11 = vector.broadcast %4 : vector<1x256xf32> to vector<8x256xf32>
    %12 = arith.mulf %10, %11 : vector<8x256xf32>
    %13 = arith.addf %8, %12 : vector<8x256xf32>
    %14 = vector.extract_strided_slice %2 {offsets = [0, 2], sizes = [8, 1], strides = [1, 1]} : vector<8x6xf32> to vector<8x1xf32>
    %15 = vector.broadcast %14 : vector<8x1xf32> to vector<8x256xf32>
    %16 = arith.addf %13, %15 : vector<8x256xf32>
    %17 = vector.extract_strided_slice %2 {offsets = [0, 3], sizes = [8, 1], strides = [1, 1]} : vector<8x6xf32> to vector<8x1xf32>
    %18 = vector.broadcast %17 : vector<8x1xf32> to vector<8x256xf32>
    %19 = vector.broadcast %3 : vector<1x256xf32> to vector<8x256xf32>
    %20 = arith.mulf %18, %19 : vector<8x256xf32>
    %21 = vector.extract_strided_slice %2 {offsets = [0, 4], sizes = [8, 1], strides = [1, 1]} : vector<8x6xf32> to vector<8x1xf32>
    %22 = vector.broadcast %21 : vector<8x1xf32> to vector<8x256xf32>
    %23 = vector.broadcast %4 : vector<1x256xf32> to vector<8x256xf32>
    %24 = arith.mulf %22, %23 : vector<8x256xf32>
    %25 = arith.addf %20, %24 : vector<8x256xf32>
    %26 = vector.extract_strided_slice %2 {offsets = [0, 5], sizes = [8, 1], strides = [1, 1]} : vector<8x6xf32> to vector<8x1xf32>
    %27 = vector.broadcast %26 : vector<8x1xf32> to vector<8x256xf32>
    %28 = arith.addf %25, %27 : vector<8x256xf32>
    %29 = arith.mulf %16, %16 : vector<8x256xf32>
    %30 = arith.mulf %28, %28 : vector<8x256xf32>
    %31 = arith.addf %29, %30 : vector<8x256xf32>
    %32 = vector.shape_cast %31 : vector<8x256xf32> to vector<1x8x256xf32>
    %cst = arith.constant dense<0.000000e+00> : vector<1xf32>
    %33 = vector.multi_reduction <add>, %32, %cst [1, 2] : vector<1x8x256xf32> to vector<1xf32>
    %34 = vector.shape_cast %33 : vector<1xf32> to vector<1x1x1xf32>
    %35 = vector.extract %34[0, 0, 0] : f32 from vector<1x1x1xf32>
    %36 = vector.broadcast %35 : f32 to vector<1x1x1xf32>
    %c0_7 = arith.constant 0 : index
    %c0_8 = arith.constant 0 : index
    %c0_9 = arith.constant 0 : index
    %37 = vector.load %arg5[%c0_7, %c0_8, %c0_9] : memref<1x1x1xf32, #tpu.memory_space<vmem>>, vector<1x1x1xf32>
    tpu.vector_store %arg5[%c0_7, %c0_8, %c0_9], %36 {strides = array<i32>} : memref<1x1x1xf32, #tpu.memory_space<vmem>>, vector<1x1x1xf32>,
    return
  }
  func.func @transform_0(%arg0: i32) -> (i32, i32) {
    %c0_i32 = arith.constant 0 : i32
    %c0_i32_0 = arith.constant 0 : i32
    return %arg0, %c0_i32 : i32, i32
  }
  func.func @transform_1(%arg0: i32) -> (i32, i32) {
    %c0_i32 = arith.constant 0 : i32
    %c0_i32_0 = arith.constant 0 : i32
    return %arg0, %c0_i32 : i32, i32
  }
  func.func @transform_2(%arg0: i32) -> (i32, i32) {
    %c0_i32 = arith.constant 0 : i32
    %c0_i32_0 = arith.constant 0 : i32
    %c0_i32_1 = arith.constant 0 : i32
    return %c0_i32, %c0_i32_0 : i32, i32
  }
  func.func @transform_3(%arg0: i32) -> (i32, i32) {
    %c0_i32 = arith.constant 0 : i32
    %c0_i32_0 = arith.constant 0 : i32
    %c0_i32_1 = arith.constant 0 : i32
    return %c0_i32, %c0_i32_0 : i32, i32
  }
  func.func @transform_4(%arg0: i32) -> (i32, i32, i32) {
    %c0_i32 = arith.constant 0 : i32
    %c0_i32_0 = arith.constant 0 : i32
    %c0_i32_1 = arith.constant 0 : i32
    return %arg0, %c0_i32, %c0_i32_0 : i32, i32, i32
  }
}

</mosaic_0001>

<llo_original>
// kernel: tpu_custom_call.1
$region0: #{tpu_custom_call.1}
  #allocation0 [shape = 'u32[]', space=smem, size = 0x4, offset = 0x4, fixed_abs, tag = 'smem constant byte address 0x4 - core index']
  #allocation1 [shape = 'u32[144,128]{1,0:T(1,128)}', space=vmem, size = 0x12000, scoped, tag = 'internal scratch']
  %s0 = inlined_call_operand.hbm [shape: f32[8,6], index: 0, kind: input, shape index: {}]
  %s1 = inlined_call_operand.hbm [shape: f32[8,6], index: 1, kind: input, shape index: {}]
  %s2 = inlined_call_operand.vmem [shape: f32[1,256], index: 2, kind: input, shape index: {}]
  %s3 = inlined_call_operand.vmem [shape: f32[1,256], index: 3, kind: input, shape index: {}]
  %s4 = inlined_call_operand.hbm [shape: f32[1,1,1], index: 4, kind: output, shape index: {}]
  %s5 = sld [smem:[#allocation0]]
  $region34: #{tpu_custom_call.1} parent=0
    _
  %s7 = ssub.s32 1, %s5
  %s8 = scalar_select 0, %s7, %s5
  $region1: #{tpu_custom_call.1} parent=0
    #allocation2 [shape = 'u8[4096]{0}', space=vmem, size = 0x1000, scoped, tag = 'input window, operand 0, single buffered']
    #allocation3 [shape = 's32[1]{0}', space=sflag, size = 0x4, scoped, tag = 'scoped memory for tpu_custom_call.1']
    #allocation4 [shape = 's32[1]{0}', space=sflag, size = 0x4, scoped, tag = 'scoped memory for tpu_custom_call.1']
    #allocation5 [shape = 'u8[4096]{0}', space=vmem, size = 0x1000, scoped, tag = 'input window, operand 1, single buffered']
    #allocation6 [shape = 's32[1]{0}', space=sflag, size = 0x4, scoped, tag = 'scoped memory for tpu_custom_call.1']
    #allocation7 [shape = 'u8[512]{0}', space=vmem, size = 0x400, scoped, tag = 'output window, operand 0, single buffered']
    %9 = vsyncpa [#allocation3], 0
    %10 = vsyncpa [#allocation6], 0
    %11 = vsyncpa [#allocation4], 0
    // Predicated region
    $region2: #{tpu_custom_call.1} parent=1 // pred_check
      _
    $region3: #{tpu_custom_call.1} parent=1 // pred_check_branch
      %13 = sbr.rel (0) target = $region5
    $region4: #{tpu_custom_call.1} parent=1 // pred_region
      %s15 = ssub.s32 128, 128
      %16 = vsyncadd [#allocation3], %s15
      %s18 = sshll.u32 [#allocation2], 4
      %s19 = int_to_ptr.vmem [resolvable:$true] %s18
      %21 = dma.hbm_to_vmem [thread:$0]  %s0, 128, %s19, [#allocation3]
    $region5: #{tpu_custom_call.1} parent=1 // pred_fallthru
      _
    // Predicated region
    $region6: #{tpu_custom_call.1} parent=1 // pred_check
      _
    $region7: #{tpu_custom_call.1} parent=1 // pred_check_branch
      %23 = sbr.rel (0) target = $region9
    $region8: #{tpu_custom_call.1} parent=1 // pred_region
      %s25 = ssub.s32 128, 128
      %26 = vsyncadd [#allocation6], %s25
      %s28 = sshll.u32 [#allocation5], 4
      %s29 = int_to_ptr.vmem [resolvable:$true] %s28
      %31 = dma.hbm_to_vmem [thread:$0]  %s1, 128, %s29, [#allocation6]
    $region9: #{tpu_custom_call.1} parent=1 // pred_fallthru
      _
    // Predicated region
    $region10: #{tpu_custom_call.1} parent=1 // pred_check
      _
    $region11: #{tpu_custom_call.1} parent=1 // pred_check_branch
      %33 = sbr.rel (0) target = $region13
    $region12: #{tpu_custom_call.1} parent=1 // pred_region
      _
    $region13: #{tpu_custom_call.1} parent=1 // pred_fallthru
      _
    // Predicated region
    $region14: #{tpu_custom_call.1} parent=1 // pred_check
      _
    $region15: #{tpu_custom_call.1} parent=1 // pred_check_branch
      %35 = sbr.rel (0) target = $region17
    $region16: #{tpu_custom_call.1} parent=1 // pred_region
      _
    $region17: #{tpu_custom_call.1} parent=1 // pred_fallthru
      _
    // Predicated region
    $region18: #{tpu_custom_call.1} parent=1 // pred_check
      _
    $region19: #{tpu_custom_call.1} parent=1 // pred_check_branch
      %37 = sbr.rel (0) target = $region21
    $region20: #{tpu_custom_call.1} parent=1 // pred_region
      %38 = dma.done [#allocation3], 128
    $region21: #{tpu_custom_call.1} parent=1 // pred_fallthru
      _
    // Predicated region
    $region22: #{tpu_custom_call.1} parent=1 // pred_check
      _
    $region23: #{tpu_custom_call.1} parent=1 // pred_check_branch
      %40 = sbr.rel (0) target = $region25
    $region24: #{tpu_custom_call.1} parent=1 // pred_region
      %41 = dma.done [#allocation6], 128
    $region25: #{tpu_custom_call.1} parent=1 // pred_fallthru
      _
    %v42 = vld [vmem:[#allocation2] sm:$0xff]
    %v43 = vld [vmem:[#allocation5] sm:$0xff]
    %v44 = vsub.f32 %v42, %v43
    %v45 = vld [vmem:[%s2] sm:$0x3]
    %v46 = vld [vmem:[%s3] sm:$0x3]
    %48 = vset.pattern.permute.xlu0 0
    %49 = vperm.xlu0 %48, %v44
    %v50 = vpop.permute.xlu0 %49
    %v53 = vlaneseq
    %v54 = vshrl.u32 %v53, 7
    %v55 = vsub.s32 0, %v54
    %v56 = vrot.slane %v45, %v55
    %v57 = vlaneseq
    %v58 = vshrl.u32 %v57, 7
    %v59 = vsub.s32 1, %v58
    %v60 = vrot.slane %v45, %v59
    %v63 = vmul.f32 %v50, %v56
    %v64 = vmul.f32 %v50, %v60
    %65 = vset.pattern.permute.xlu0 1
    %66 = vperm.xlu0 %65, %v44
    %v67 = vpop.permute.xlu0 %66
    %v70 = vlaneseq
    %v71 = vshrl.u32 %v70, 7
    %v72 = vsub.s32 0, %v71
    %v73 = vrot.slane %v46, %v72
    %v74 = vlaneseq
    %v75 = vshrl.u32 %v74, 7
    %v76 = vsub.s32 1, %v75
    %v77 = vrot.slane %v46, %v76
    %v80 = vmul.f32 %v67, %v73
    %v81 = vmul.f32 %v67, %v77
    %v82 = vadd.f32 %v63, %v80
    %v83 = vadd.f32 %v64, %v81
    %84 = vset.pattern.permute.xlu0 2
    %85 = vperm.xlu0 %84, %v44
    %v86 = vpop.permute.xlu0 %85
    %v88 = vadd.f32 %v82, %v86
    %v89 = vadd.f32 %v83, %v86
    %90 = vset.pattern.permute.xlu0 3
    %91 = vperm.xlu0 %90, %v44
    %v92 = vpop.permute.xlu0 %91
    %v94 = vmul.f32 %v92, %v56
    %v95 = vmul.f32 %v92, %v60
    %96 = vset.pattern.permute.xlu0 4
    %97 = vperm.xlu0 %96, %v44
    %v98 = vpop.permute.xlu0 %97
    %v100 = vmul.f32 %v98, %v73
    %v101 = vmul.f32 %v98, %v77
    %v102 = vadd.f32 %v94, %v100
    %v103 = vadd.f32 %v95, %v101
    %104 = vset.pattern.permute.xlu0 5
    %105 = vperm.xlu0 %104, %v44
    %v106 = vpop.permute.xlu0 %105
    %v108 = vadd.f32 %v102, %v106
    %v109 = vadd.f32 %v103, %v106
    %v110 = vmul.f32 %v88, %v88
    %v111 = vmul.f32 %v89, %v89
    %v112 = vmul.f32 %v108, %v108
    %v113 = vmul.f32 %v109, %v109
    %v114 = vadd.f32 %v110, %v112
    %v115 = vadd.f32 %v111, %v113
    %v116 = vadd.f32 %v114, %v115
    %117 = vadd.xlane.f32.xlu0 %v116
    %v118 = vpop.xlane.xlu0 %117
    %v119 = vrot.slane %v118, 4
    %v120 = vadd.f32 %v118, %v119
    %v121 = vrot.slane %v120, 2
    %v122 = vadd.f32 %v120, %v121
    %v123 = vrot.slane %v122, 1
    %v124 = vadd.f32 %v122, %v123
    %s125 = vtos %v124
    %v126 = vstv %s125
    %vm127 = vcmask 0
    %128 = vst.msk [vmem:[#allocation7] sm:$0x1] %vm127, %v126
    // Predicated region
    $region26: #{tpu_custom_call.1} parent=1 // pred_check
      _
    $region27: #{tpu_custom_call.1} parent=1 // pred_check_branch
      %130 = sbr.rel (0) target = $region29
    $region28: #{tpu_custom_call.1} parent=1 // pred_region
      %s132 = ssub.s32 16, 16
      %133 = vsyncadd [#allocation4], %s132
      %s135 = sshll.u32 [#allocation7], 4
      %s136 = int_to_ptr.vmem [resolvable:$true] %s135
      %138 = dma.vmem_to_hbm [thread:$0]  %s136, 16, %s4, [#allocation4]
    $region29: #{tpu_custom_call.1} parent=1 // pred_fallthru
      _
    // Predicated region
    $region30: #{tpu_custom_call.1} parent=1 // pred_check
      _
    $region31: #{tpu_custom_call.1} parent=1 // pred_check_branch
      %140 = sbr.rel (0) target = $region33
    $region32: #{tpu_custom_call.1} parent=1 // pred_region
      %141 = dma.done [#allocation4], 16
    $region33: #{tpu_custom_call.1} parent=1 // pred_fallthru
      _
    %142 = vsyncpa [#allocation3], 1
    %143 = vsyncpa [#allocation6], 1
    %144 = vsyncpa [#allocation4], 1

</llo_original>
